<compile_context>
chip_gen: v6e
topology: v6e:2x2x1
jax: 0.10.0
libtpu: 0.0.40
codegen_flags: <defaults>
</compile_context>

<pallas_src>
import jax
import jax.numpy as jnp
from jax.experimental import pallas as pl
from jax.experimental.pallas import tpu as pltpu

LN_EPS = 1e-6  # BERT-style LayerNorm epsilon


# ----------------------------- sizing helpers ------------------------------

def _round_up(n, m):
    return ((n + m - 1) // m) * m


def _vmem_budget():
    """Per-generation VMEM budget (~80% of capacity; 64 MiB fallback)."""
    try:
        cap = int(pltpu.get_tpu_info().vmem_capacity_bytes)
    except Exception:
        cap = 64 * 1024 * 1024
    return int(0.8 * cap)


def _pick_block_rows(n_rows, c, itemsize, vmem_budget):
    """Row-tile heuristic aware of C, dtype and the VMEM budget."""
    if c <= 512:
        # Purely HBM-bound at small C: large tiles amortize ~0.35us/step.
        target = 2048
    else:
        # Keep 2x(in) + 2x(out) double-buffered row tiles within ~half the
        # budget; the other half goes to the (single-buffered) resident weight
        # or the K-tiled weight stream + accumulator.
        per_row = 4 * c * itemsize
        target = max(64, (vmem_budget // 2) // per_row)
    target = int(min(target, 2048))
    # Keep >= ~4 grid steps so "parallel" can shard across both v7x TCs.
    if n_rows >= 32:
        target = min(target, _round_up(pl.cdiv(n_rows, 4), 8))
    if n_rows <= target:
        return n_rows                      # block == full dim (always legal)
    return max(8, (target // 8) * 8)


def _resolve_tm(n_rows, c, itemsize, vmem_budget, block_rows=None):
    if block_rows is None:
        block_rows = _pick_block_rows(n_rows, c, itemsize, vmem_budget)
    if n_rows <= block_rows:
        return n_rows
    return max(8, (block_rows // 8) * 8)


def _compiler_params(n_axes, vmem_limit):
    sem = ("parallel",) + ("arbitrary",) * (n_axes - 1)
    return pltpu.CompilerParams(dimension_semantics=sem,
                                vmem_limit_bytes=vmem_limit)


# ----------------------------- Pallas kernels -------------------------------

def _fused_sublayer_kernel(x_ref, gamma_ref, beta_ref, w_ref, b_ref, m_ref,
                           o_ref):
    """out = x + (LayerNorm(x) @ W + b) * mask, resident-W path (one tile)."""
    x = x_ref[...].astype(jnp.float32)                       # (TM, C)
    c = x.shape[-1]

    # One-pass LN statistics, clamped (E[x^2]-mean^2 can dip < 0 in f32).
    s1 = jnp.sum(x, axis=-1, keepdims=True)
    s2 = jnp.sum(x * x, axis=-1, keepdims=True)
    mean = s1 * (1.0 / c)
    var = jnp.maximum(s2 * (1.0 / c) - mean * mean, 0.0)
    inv = jax.lax.rsqrt(var + LN_EPS)                        # EUP
    normed = (x - mean) * inv * gamma_ref[...].astype(jnp.float32) \
        + beta_ref[...].astype(jnp.float32)

    # MXU matmul, f32 accumulation. Pass a bf16 W on v6e/v7x for ~4x MXU
    # throughput (activations are cast to the weight dtype; LN stays f32).
    y = jnp.dot(normed.astype(w_ref.dtype), w_ref[...],
                preferred_element_type=jnp.float32)

    # TODO(synk): training-mode dropout (eval mode => identity).
    m = m_ref[...].astype(jnp.float32)
    o_ref[...] = (x + (y + b_ref[...].astype(jnp.float32)) * m).astype(o_ref.dtype)


def _fused_sublayer_ktile_kernel(x_ref, gamma_ref, beta_ref, w_ref, b_ref,
                                 m_ref, o_ref, acc_ref, mean_ref, inv_ref):
    """K-tiled fused path for large C: W streams in (tk, C) slabs, f32 acc."""
    k = pl.program_id(1)
    tk = w_ref.shape[0]

    @pl.when(k == 0)
    def _():
        x = x_ref[...].astype(jnp.float32)
        c = x.shape[-1]
        s1 = jnp.sum(x, axis=-1, keepdims=True)
        s2 = jnp.sum(x * x, axis=-1, keepdims=True)
        mean = s1 * (1.0 / c)
        var = jnp.maximum(s2 * (1.0 / c) - mean * mean, 0.0)
        mean_ref[...] = mean
        inv_ref[...] = jax.lax.rsqrt(var + LN_EPS)
        acc_ref[...] = jnp.zeros_like(acc_ref)

    start = pl.multiple_of(k * tk, tk)
    xk = x_ref[:, pl.ds(start, tk)].astype(jnp.float32)
    gk = gamma_ref[:, pl.ds(start, tk)].astype(jnp.float32)
    bk = beta_ref[:, pl.ds(start, tk)].astype(jnp.float32)
    normed = (xk - mean_ref[...]) * inv_ref[...] * gk + bk
    acc_ref[...] += jnp.dot(normed.astype(w_ref.dtype), w_ref[...],
                            preferred_element_type=jnp.float32)

    @pl.when(k == pl.num_programs(1) - 1)
    def _():
        x = x_ref[...].astype(jnp.float32)
        m = m_ref[...].astype(jnp.float32)
        # TODO(synk): training-mode dropout (eval mode => identity).
        o_ref[...] = (x + (acc_ref[...] + b_ref[...].astype(jnp.float32)) * m
                      ).astype(o_ref.dtype)


def _layernorm_kernel(x_ref, gamma_ref, beta_ref, o_ref):
    x = x_ref[...].astype(jnp.float32)
    c = x.shape[-1]
    s1 = jnp.sum(x, axis=-1, keepdims=True)
    s2 = jnp.sum(x * x, axis=-1, keepdims=True)
    mean = s1 * (1.0 / c)
    var = jnp.maximum(s2 * (1.0 / c) - mean * mean, 0.0)
    inv = jax.lax.rsqrt(var + LN_EPS)
    o_ref[...] = ((x - mean) * inv * gamma_ref[...].astype(jnp.float32)
                  + beta_ref[...].astype(jnp.float32)).astype(o_ref.dtype)


def _residual_add_kernel(res_ref, x_ref, o_ref):
    o_ref[...] = res_ref[...] + x_ref[...]


# ------------------------------- wrappers ------------------------------------

def sublayer_connection_fused(x, mask, w, b, gamma, beta, *,
                              block_rows=None, tk=512, force_ktile=False):
    """Fully fused SublayerConnection for the masked-linear sublayer.

    x: [B, T, C], mask: [B, T], w: [C, C] (f32 or bf16), b/gamma/beta: [C]
    returns  x + (LayerNorm(x) @ W + b) * mask[..., None]
    """
    B, T, C = x.shape
    N = B * T
    x2 = x.reshape(N, C)
    m2 = mask.reshape(N, 1).astype(x.dtype)
    g2 = gamma.reshape(1, C)
    bt2 = beta.reshape(1, C)
    b2 = b.reshape(1, C)

    budget = _vmem_budget()
    tm = _resolve_tm(N, C, x.dtype.itemsize, budget, block_rows)
    rows_grid = pl.cdiv(N, tm)                 # ragged last tile OK (no pad)

    # Resident-W fast path only if the (single-buffered) weight plus the
    # pipelined x/out tiles fit comfortably in the VMEM budget.
    w_bytes = C * C * w.dtype.itemsize
    io_bytes = 4 * tm * C * x.dtype.itemsize   # 2x in + 2x out tiles
    ktile_ok = (C > tk) and (C % tk == 0)
    use_ktile = ktile_ok and (force_ktile or (w_bytes + io_bytes > 0.7 * budget))

    if not use_ktile:
        out = pl.pallas_call(
            _fused_sublayer_kernel,
            out_shape=jax.ShapeDtypeStruct((N, C), x.dtype),
            grid_spec=pltpu.PrefetchScalarGridSpec(
                num_scalar_prefetch=0,
                grid=(rows_grid,),
                in_specs=[
                    pl.BlockSpec((tm, C), lambda i: (i, 0)),   # x (+residual)
                    pl.BlockSpec((1, C), lambda i: (0, 0),
                                 pipeline_mode=pl.Buffered(1)),  # gamma
                    pl.BlockSpec((1, C), lambda i: (0, 0),
                                 pipeline_mode=pl.Buffered(1)),  # beta
                    pl.BlockSpec((C, C), lambda i: (0, 0),
                                 pipeline_mode=pl.Buffered(1)),  # W (resident)
                    pl.BlockSpec((1, C), lambda i: (0, 0),
                                 pipeline_mode=pl.Buffered(1)),  # bias
                    pl.BlockSpec((tm, 1), lambda i: (i, 0)),     # per-row mask
                ],
                out_specs=pl.BlockSpec((tm, C), lambda i: (i, 0)),
            ),
            compiler_params=_compiler_params(1, budget),
        )(x2, g2, bt2, w, b2, m2)
        return out.reshape(B, T, C)

    out = pl.pallas_call(
        _fused_sublayer_ktile_kernel,
        out_shape=jax.ShapeDtypeStruct((N, C), x.dtype),
        grid_spec=pltpu.PrefetchScalarGridSpec(
            num_scalar_prefetch=0,
            grid=(rows_grid, C // tk),
            in_specs=[
                pl.BlockSpec((tm, C), lambda i, k: (i, 0)),      # x (full row)
                pl.BlockSpec((1, C), lambda i, k: (0, 0),
                             pipeline_mode=pl.Buffered(1)),       # gamma
                pl.BlockSpec((1, C), lambda i, k: (0, 0),
                             pipeline_mode=pl.Buffered(1)),       # beta
                pl.BlockSpec((tk, C), lambda i, k: (k, 0)),       # W k-slab
                pl.BlockSpec((1, C), lambda i, k: (0, 0),
                             pipeline_mode=pl.Buffered(1)),       # bias
                pl.BlockSpec((tm, 1), lambda i, k: (i, 0)),       # mask
            ],
            out_specs=pl.BlockSpec((tm, C), lambda i, k: (i, 0)),
            scratch_shapes=[pltpu.VMEM((tm, C), jnp.float32),     # acc
                            pltpu.VMEM((tm, 1), jnp.float32),     # mean
                            pltpu.VMEM((tm, 1), jnp.float32)],    # rsqrt(var)
        ),
        compiler_params=_compiler_params(2, budget),
    )(x2, g2, bt2, w, b2, m2)
    return out.reshape(B, T, C)


def layer_norm_pallas(x2d, gamma, beta, block_rows=None):
    """x2d: [N, C] -> [N, C], LayerNorm over C (ragged row grid, no padding)."""
    N, C = x2d.shape
    budget = _vmem_budget()
    tm = _resolve_tm(N, C, x2d.dtype.itemsize, budget, block_rows)
    return pl.pallas_call(
        _layernorm_kernel,
        out_shape=jax.ShapeDtypeStruct((N, C), x2d.dtype),
        grid_spec=pltpu.PrefetchScalarGridSpec(
            num_scalar_prefetch=0,
            grid=(pl.cdiv(N, tm),),
            in_specs=[
                pl.BlockSpec((tm, C), lambda i: (i, 0)),
                pl.BlockSpec((1, C), lambda i: (0, 0),
                             pipeline_mode=pl.Buffered(1)),
                pl.BlockSpec((1, C), lambda i: (0, 0),
                             pipeline_mode=pl.Buffered(1)),
            ],
            out_specs=pl.BlockSpec((tm, C), lambda i: (i, 0)),
        ),
        compiler_params=_compiler_params(1, budget),
    )(x2d, gamma.reshape(1, C), beta.reshape(1, C))


def residual_add_pallas(res2d, x2d, block_rows=None):
    # TODO(synk): fuse this add into the sublayer's final kernel (epilogue
    # hook) / alias in-place when the sublayer is itself a Pallas kernel.
    N, C = res2d.shape
    budget = _vmem_budget()
    tm = _resolve_tm(N, C, res2d.dtype.itemsize, budget, block_rows)
    return pl.pallas_call(
        _residual_add_kernel,
        out_shape=jax.ShapeDtypeStruct((N, C), res2d.dtype),
        grid_spec=pltpu.PrefetchScalarGridSpec(
            num_scalar_prefetch=0,
            grid=(pl.cdiv(N, tm),),
            in_specs=[pl.BlockSpec((tm, C), lambda i: (i, 0)),
                      pl.BlockSpec((tm, C), lambda i: (i, 0))],
            out_specs=pl.BlockSpec((tm, C), lambda i: (i, 0)),
        ),
        compiler_params=_compiler_params(1, budget),
    )(res2d, x2d)


def sublayer_connection(x, mask, sublayer_fn, gamma, beta):
    """Generic SublayerConnection.forward for an ARBITRARY injected sublayer.

    Pre-norm, opaque sublayer, eval-mode dropout, and the middle-timestep
    residual when the sublayer collapses T to 1 — exactly as the module.
    """
    B, T, C = x.shape
    res = x
    normed = layer_norm_pallas(x.reshape(B * T, C), gamma, beta).reshape(B, T, C)
    out = sublayer_fn(normed, mask)
    # TODO(synk): training-mode dropout (eval mode => identity).
    if out.shape[1] == 1 and T > 1:
        res = res[:, T // 2:T // 2 + 1]
    Bo, To, Co = out.shape
    y = residual_add_pallas(res.reshape(Bo * To, Co), out.reshape(Bo * To, Co))
    return y.reshape(Bo, To, Co)


# -------------------------------- reference ----------------------------------

def _ref_forward(x, mask, sublayer_fn, gamma, beta):
    mean = jnp.mean(x, axis=-1, keepdims=True)
    var = jnp.mean((x - mean) ** 2, axis=-1, keepdims=True)
    normed = (x - mean) / jnp.sqrt(var + LN_EPS) * gamma + beta
    out = sublayer_fn(normed, mask)
    B, T, C = x.shape
    res = x
    if out.shape[1] == 1 and T > 1:
        res = res[:, T // 2:T // 2 + 1]
    return res + out


# ---------------------------------- main --------------------------------------

if __name__ == "__main__":
    # NOTE: demo shapes are for correctness only; tune TM / buffering with
    # N >= 8*TM and a production C (the review's point about 1-step grids).
    key = jax.random.PRNGKey(0)
    kx, kw, kb, km, kg, kbt, kw2, kb2 = jax.random.split(key, 8)

    B, T, C = 2, 9, 128          # N = 18: exercises the ragged (no-pad) grid
    x = jax.random.normal(kx, (B, T, C), dtype=jnp.float32)
    mask = (jax.random.uniform(km, (B, T)) > 0.3).astype(jnp.float32)
    gamma = 1.0 + 0.1 * jax.random.normal(kg, (C,), dtype=jnp.float32)
    beta = 0.1 * jax.random.normal(kbt, (C,), dtype=jnp.float32)
    w = jax.random.normal(kw, (C, C), dtype=jnp.float32) * 0.05
    b = jax.random.normal(kb, (C,), dtype=jnp.float32) * 0.05

    def sublayer_fn_ref(normed, m):
        return (jnp.einsum("btc,cd->btd", normed, w) + b) * m[..., None]

    # case 1: resident-W fused path, small block_rows => multi-step ragged grid
    y = sublayer_connection_fused(x, mask, w, b, gamma, beta, block_rows=8)
    jax.block_until_ready(y)
    y_ref = _ref_forward(x, mask, sublayer_fn_ref, gamma, beta)
    assert y.shape == (B, T, C)
    assert jnp.allclose(y, y_ref, atol=1e-4, rtol=1e-4)

    # case 2: bf16 weight (v6e/v7x MXU fast path), f32 LN and accumulation
    y_bf = sublayer_connection_fused(x, mask, w.astype(jnp.bfloat16), b,
                                     gamma, beta)
    jax.block_until_ready(y_bf)
    assert jnp.allclose(y_bf, y_ref, atol=1e-1, rtol=1e-1)

    # case 3: K-tiled fused path (forced at small C so the demo exercises it)
    C2 = 256
    x2 = jax.random.normal(kx, (B, T, C2), dtype=jnp.float32)
    gamma2 = 1.0 + 0.1 * jax.random.normal(kg, (C2,), dtype=jnp.float32)
    beta2 = 0.1 * jax.random.normal(kbt, (C2,), dtype=jnp.float32)
    w2 = jax.random.normal(kw2, (C2, C2), dtype=jnp.float32) * 0.05
    b2 = jax.random.normal(kb2, (C2,), dtype=jnp.float32) * 0.05

    def sublayer_fn_ref2(normed, m):
        return (jnp.einsum("btc,cd->btd", normed, w2) + b2) * m[..., None]

    y2 = sublayer_connection_fused(x2, mask, w2, b2, gamma2, beta2,
                                   tk=128, force_ktile=True)
    jax.block_until_ready(y2)
    y2_ref = _ref_forward(x2, mask, sublayer_fn_ref2, gamma2, beta2)
    assert jnp.allclose(y2, y2_ref, atol=1e-3, rtol=1e-3)

    # case 4: arbitrary sublayer collapsing T to 1 (generic path, middle-
    # timestep residual slice)
    def pooling_sublayer(normed, m):
        return sublayer_fn_ref(normed, m)[:, :1]

    y3 = sublayer_connection(x, mask, pooling_sublayer, gamma, beta)
    jax.block_until_ready(y3)
    y3_ref = _ref_forward(x, mask, pooling_sublayer, gamma, beta)
    assert y3.shape == (B, 1, C)
    assert jnp.allclose(y3, y3_ref, atol=1e-4, rtol=1e-4)

    print("KERNEL_OK")
</pallas_src>

<mosaic_0001>
module attributes {stable_mosaic.version = 11 : i64} {
  func.func @_fused_sublayer_kernel(%arg0: i32, %arg1: memref<8x128xf32, #tpu.memory_space<vmem>>, %arg2: memref<1x128xf32, #tpu.memory_space<vmem>>, %arg3: memref<1x128xf32, #tpu.memory_space<vmem>>, %arg4: memref<128x128xf32, #tpu.memory_space<vmem>>, %arg5: memref<1x128xf32, #tpu.memory_space<vmem>>, %arg6: memref<8x1xf32, #tpu.memory_space<vmem>>, %arg7: memref<8x128xf32, #tpu.memory_space<vmem>>) attributes {dimension_semantics = [#tpu.dimension_semantics<parallel>], iteration_bounds = array<i64: 3>, scalar_prefetch = 0 : i64, scratch_operands = 0 : i64, tpu.core_type = #tpu.core_type<tc>, window_params = [{transform_indices = @transform_0, window_bounds = array<i64: 8, 128>}, {pipeline_mode = #tpu.pipeline_mode<synchronous>, transform_indices = @transform_1, window_bounds = array<i64: 1, 128>}, {pipeline_mode = #tpu.pipeline_mode<synchronous>, transform_indices = @transform_2, window_bounds = array<i64: 1, 128>}, {pipeline_mode = #tpu.pipeline_mode<synchronous>, transform_indices = @transform_3, window_bounds = array<i64: 128, 128>}, {pipeline_mode = #tpu.pipeline_mode<synchronous>, transform_indices = @transform_4, window_bounds = array<i64: 1, 128>}, {transform_indices = @transform_5, window_bounds = array<i64: 8, 1>}, {transform_indices = @transform_6, window_bounds = array<i64: 8, 128>}]} {
    %c0 = arith.constant 0 : index
    %c0_0 = arith.constant 0 : index
    %0 = vector.load %arg1[%c0, %c0_0] : memref<8x128xf32, #tpu.memory_space<vmem>>, vector<8x128xf32>
    %cst = arith.constant dense<0.000000e+00> : vector<8xf32>
    %1 = vector.multi_reduction <add>, %0, %cst [1] : vector<8x128xf32> to vector<8xf32>
    %2 = vector.shape_cast %1 : vector<8xf32> to vector<8x1xf32>
    %3 = arith.mulf %0, %0 : vector<8x128xf32>
    %cst_1 = arith.constant dense<0.000000e+00> : vector<8xf32>
    %4 = vector.multi_reduction <add>, %3, %cst_1 [1] : vector<8x128xf32> to vector<8xf32>
    %5 = vector.shape_cast %4 : vector<8xf32> to vector<8x1xf32>
    %cst_2 = arith.constant 7.812500e-03 : f32
    %6 = vector.broadcast %cst_2 : f32 to vector<8x1xf32>
    %7 = arith.mulf %2, %6 : vector<8x1xf32>
    %cst_3 = arith.constant 7.812500e-03 : f32
    %8 = vector.broadcast %cst_3 : f32 to vector<8x1xf32>
    %9 = arith.mulf %5, %8 : vector<8x1xf32>
    %10 = arith.mulf %7, %7 : vector<8x1xf32>
    %11 = arith.subf %9, %10 : vector<8x1xf32>
    %cst_4 = arith.constant 0.000000e+00 : f32
    %12 = vector.broadcast %cst_4 : f32 to vector<8x1xf32>
    %13 = arith.maximumf %11, %12 : vector<8x1xf32>
    %cst_5 = arith.constant 9.99999997E-7 : f32
    %14 = vector.broadcast %cst_5 : f32 to vector<8x1xf32>
    %15 = arith.addf %13, %14 : vector<8x1xf32>
    %16 = math.rsqrt %15 : vector<8x1xf32>
    %17 = vector.broadcast %7 : vector<8x1xf32> to vector<8x128xf32>
    %18 = arith.subf %0, %17 : vector<8x128xf32>
    %19 = vector.broadcast %16 : vector<8x1xf32> to vector<8x128xf32>
    %20 = arith.mulf %18, %19 : vector<8x128xf32>
    %c0_6 = arith.constant 0 : index
    %c0_7 = arith.constant 0 : index
    %21 = vector.load %arg2[%c0_6, %c0_7] : memref<1x128xf32, #tpu.memory_space<vmem>>, vector<1x128xf32>
    %22 = vector.broadcast %21 : vector<1x128xf32> to vector<8x128xf32>
    %23 = arith.mulf %20, %22 : vector<8x128xf32>
    %c0_8 = arith.constant 0 : index
    %c0_9 = arith.constant 0 : index
    %24 = vector.load %arg3[%c0_8, %c0_9] : memref<1x128xf32, #tpu.memory_space<vmem>>, vector<1x128xf32>
    %25 = vector.broadcast %24 : vector<1x128xf32> to vector<8x128xf32>
    %26 = arith.addf %23, %25 : vector<8x128xf32>
    %c0_10 = arith.constant 0 : index
    %c0_11 = arith.constant 0 : index
    %27 = vector.load %arg4[%c0_10, %c0_11] : memref<128x128xf32, #tpu.memory_space<vmem>>, vector<128x128xf32>
    %cst_12 = arith.constant dense<0.000000e+00> : vector<8x128xf32>
    %28 = tpu.matmul %26, %27, %cst_12 {dimension_numbers = #tpu.dot_dimension_numbers<[1], [0], [0], [1], [0, 0, 1, 1], [], []>} : vector<8x128xf32>, vector<128x128xf32>, vector<8x128xf32> -> vector<8x128xf32>
    %c0_13 = arith.constant 0 : index
    %c0_14 = arith.constant 0 : index
    %29 = vector.load %arg6[%c0_13, %c0_14] : memref<8x1xf32, #tpu.memory_space<vmem>>, vector<8x1xf32>
    %c0_15 = arith.constant 0 : index
    %c0_16 = arith.constant 0 : index
    %30 = vector.load %arg5[%c0_15, %c0_16] : memref<1x128xf32, #tpu.memory_space<vmem>>, vector<1x128xf32>
    %31 = vector.broadcast %30 : vector<1x128xf32> to vector<8x128xf32>
    %32 = arith.addf %28, %31 : vector<8x128xf32>
    %33 = vector.broadcast %29 : vector<8x1xf32> to vector<8x128xf32>
    %34 = arith.mulf %32, %33 : vector<8x128xf32>
    %35 = arith.addf %0, %34 : vector<8x128xf32>
    %c0_17 = arith.constant 0 : index
    %c0_18 = arith.constant 0 : index
    %36 = vector.load %arg7[%c0_17, %c0_18] : memref<8x128xf32, #tpu.memory_space<vmem>>, vector<8x128xf32>
    tpu.vector_store %arg7[%c0_17, %c0_18], %35 {strides = array<i32>} : memref<8x128xf32, #tpu.memory_space<vmem>>, vector<8x128xf32>,
    return
  }
  func.func @transform_0(%arg0: i32) -> (i32, i32) {
    %c0_i32 = arith.constant 0 : i32
    %c0_i32_0 = arith.constant 0 : i32
    return %arg0, %c0_i32 : i32, i32
  }
  func.func @transform_1(%arg0: i32) -> (i32, i32) {
    %c0_i32 = arith.constant 0 : i32
    %c0_i32_0 = arith.constant 0 : i32
    %c0_i32_1 = arith.constant 0 : i32
    return %c0_i32, %c0_i32_0 : i32, i32
  }
  func.func @transform_2(%arg0: i32) -> (i32, i32) {
    %c0_i32 = arith.constant 0 : i32
    %c0_i32_0 = arith.constant 0 : i32
    %c0_i32_1 = arith.constant 0 : i32
    return %c0_i32, %c0_i32_0 : i32, i32
  }
  func.func @transform_3(%arg0: i32) -> (i32, i32) {
    %c0_i32 = arith.constant 0 : i32
    %c0_i32_0 = arith.constant 0 : i32
    %c0_i32_1 = arith.constant 0 : i32
    return %c0_i32, %c0_i32_0 : i32, i32
  }
  func.func @transform_4(%arg0: i32) -> (i32, i32) {
    %c0_i32 = arith.constant 0 : i32
    %c0_i32_0 = arith.constant 0 : i32
    %c0_i32_1 = arith.constant 0 : i32
    return %c0_i32, %c0_i32_0 : i32, i32
  }
  func.func @transform_5(%arg0: i32) -> (i32, i32) {
    %c0_i32 = arith.constant 0 : i32
    %c0_i32_0 = arith.constant 0 : i32
    return %arg0, %c0_i32 : i32, i32
  }
  func.func @transform_6(%arg0: i32) -> (i32, i32) {
    %c0_i32 = arith.constant 0 : i32
    %c0_i32_0 = arith.constant 0 : i32
    return %arg0, %c0_i32 : i32, i32
  }
}

</mosaic_0001>

<llo_original>
// kernel: tpu_custom_call.1
$region0: #{tpu_custom_call.1}
  #allocation0 [shape = 'u32[]', space=smem, size = 0x4, offset = 0x4, fixed_abs, tag = 'smem constant byte address 0x4 - core index']
  #allocation1 [shape = 'u32[144,128]{1,0:T(1,128)}', space=vmem, size = 0x12000, scoped, tag = 'internal scratch']
  %s0 = inlined_call_operand.vmem [shape: f32[18,128], index: 0, kind: input, shape index: {}]
  %s1 = inlined_call_operand.vmem [shape: f32[1,128], index: 1, kind: input, shape index: {}]
  %s2 = inlined_call_operand.vmem [shape: f32[1,128], index: 2, kind: input, shape index: {}]
  %s3 = inlined_call_operand.hbm [shape: f32[128,128], index: 3, kind: input, shape index: {}]
  %s4 = inlined_call_operand.vmem [shape: f32[1,128], index: 4, kind: input, shape index: {}]
  %s5 = inlined_call_operand.vmem [shape: f32[18,1], index: 5, kind: input, shape index: {}]
  %s6 = inlined_call_operand.hbm [shape: f32[18,128], index: 6, kind: output, shape index: {}]
  %s7 = sld [smem:[#allocation0]]
  $region61: #{tpu_custom_call.1} parent=0
    _
  %s9 = ssub.s32 1, %s7
  %s10 = scalar_select 0, %s9, %s7
  $region1: #{tpu_custom_call.1} parent=0
    #allocation2 [shape = 'u8[65536]{0}', space=vmem, size = 0x10000, scoped, tag = 'input window, operand 3, single buffered']
    #allocation3 [shape = 's32[2]{0}', space=sflag, size = 0x8, scoped, tag = 'scoped memory for tpu_custom_call.1']
    #allocation4 [shape = 's32[2]{0}', space=sflag, size = 0x8, scoped, tag = 'scoped memory for tpu_custom_call.1']
    #allocation5 [shape = 'u8[8192]{0}', space=vmem, size = 0x2000, scoped, tag = 'output window, operand 0']
    %11 = vsyncpa [#allocation3], 0
    %12 = vsyncpa [#allocation4], 0
    %s13 = scalar_lea.sflag [#allocation4], 1
    %14 = vsyncpa %s13, 0
    loop: start=0, step=1, limit=5
    $region2: #{tpu_custom_call.1} parent=1 // loop_pre_header
      _
    $region3: #{tpu_custom_call.1} parent=1 // loop_header
      %s16 = sphi 0, %s20
      %p17 = scmp.ge.s32.totalorder %s16, 5
      %s26 = sphi 0, %s28
      %s29 = sphi 0, %s26
      %s30 = sphi 0, %s29
      %s46 = sphi 0, %s30
      %s50 = sphi 0, %s50
      %s52 = sphi 0, %s50
      %s53 = sphi 0, %s52
      %s67 = sphi 0, %s53
      %s71 = sphi 0, %s71
      %s73 = sphi 0, %s71
      %s74 = sphi 0, %s73
      %s88 = sphi 0, %s74
      %s92 = sphi 0, %s92
      %s94 = sphi 0, %s92
      %s95 = sphi 0, %s94
      %s109 = sphi 0, %s95
      %s113 = sphi 0, %s113
      %s115 = sphi 0, %s113
      %s116 = sphi 0, %s115
      %s130 = sphi 0, %s116
      %s136 = sphi 0, %s138
      %s139 = sphi 0, %s136
      %s140 = sphi 0, %s139
      %s156 = sphi 0, %s140
      %s162 = sphi 0, %s164
      %s165 = sphi 0, %s162
      %s166 = sphi 0, %s165
      %s182 = sphi 0, %s166
    $region4: #{tpu_custom_call.1} parent=1 // loop_header_branch
      %19 = sbr.rel (%p17) target = $region8
    $region5: #{tpu_custom_call.1} parent=1 // loop_body
      %s21 = ssub.s32 %s16, 1
      %s22 = ssub.s32 %s16, 2
      %s23 = sadd.s32 %s16, 1
      %s24 = ssub.s32 %s16, %s23
      %p25 = scmp.eq.s32.totalorder %s24, 0
      %s27 = sadd.s32 %s26, 1
      %s28 = scalar_select %p25, %s26, %s27
      %p31 = pneg %p25
      %p32 = scmp.eq.s32.totalorder %s16, 2
      %p33 = por %p31, %p32
      %p34 = scmp.ne.s32.totalorder %s26, %s29
      %p35 = scmp.eq.s32.totalorder %s16, 0
      %p36 = por %p34, %p35
      %p37 = scmp.ne.s32.totalorder %s26, %s29
      %p38 = scmp.eq.s32.totalorder %s21, 2
      %p39 = por %p37, %p38
      %p40 = scmp.ne.s32.totalorder %s29, %s30
      %p41 = scmp.eq.s32.totalorder %s21, 0
      %p42 = por %p40, %p41
      %p43 = scmp.ne.s32.totalorder %s29, %s30
      %p44 = scmp.eq.s32.totalorder %s22, 2
      %p45 = por %p43, %p44
      %p47 = scmp.ne.s32.totalorder %s30, %s46
      %p48 = scmp.eq.s32.totalorder %s22, 0
      %p49 = por %p47, %p48
      %s51 = sadd.s32 %s50, 1
      %p54 = scmp.eq.s32.totalorder %s16, 2
      %p55 = scmp.ne.s32.totalorder %s50, %s52
      %p56 = scmp.eq.s32.totalorder %s16, 0
      %p57 = por %p55, %p56
      %p58 = scmp.ne.s32.totalorder %s50, %s52
      %p59 = scmp.eq.s32.totalorder %s21, 2
      %p60 = por %p58, %p59
      %p61 = scmp.ne.s32.totalorder %s52, %s53
      %p62 = scmp.eq.s32.totalorder %s21, 0
      %p63 = por %p61, %p62
      %p64 = scmp.ne.s32.totalorder %s52, %s53
      %p65 = scmp.eq.s32.totalorder %s22, 2
      %p66 = por %p64, %p65
      %p68 = scmp.ne.s32.totalorder %s53, %s67
      %p69 = scmp.eq.s32.totalorder %s22, 0
      %p70 = por %p68, %p69
      %s72 = sadd.s32 %s71, 1
      %p75 = scmp.eq.s32.totalorder %s16, 2
      %p76 = scmp.ne.s32.totalorder %s71, %s73
      %p77 = scmp.eq.s32.totalorder %s16, 0
      %p78 = por %p76, %p77
      %p79 = scmp.ne.s32.totalorder %s71, %s73
      %p80 = scmp.eq.s32.totalorder %s21, 2
      %p81 = por %p79, %p80
      %p82 = scmp.ne.s32.totalorder %s73, %s74
      %p83 = scmp.eq.s32.totalorder %s21, 0
      %p84 = por %p82, %p83
      %p85 = scmp.ne.s32.totalorder %s73, %s74
      %p86 = scmp.eq.s32.totalorder %s22, 2
      %p87 = por %p85, %p86
      %p89 = scmp.ne.s32.totalorder %s74, %s88
      %p90 = scmp.eq.s32.totalorder %s22, 0
      %p91 = por %p89, %p90
      %s93 = sadd.s32 %s92, 1
      %p96 = scmp.eq.s32.totalorder %s16, 2
      %p97 = scmp.ne.s32.totalorder %s92, %s94
      %p98 = scmp.eq.s32.totalorder %s16, 0
      %p99 = por %p97, %p98
      %p100 = scmp.ne.s32.totalorder %s92, %s94
      %p101 = scmp.eq.s32.totalorder %s21, 2
      %p102 = por %p100, %p101
      %p103 = scmp.ne.s32.totalorder %s94, %s95
      %p104 = scmp.eq.s32.totalorder %s21, 0
      %p105 = por %p103, %p104
      %p106 = scmp.ne.s32.totalorder %s94, %s95
      %p107 = scmp.eq.s32.totalorder %s22, 2
      %p108 = por %p106, %p107
      %p110 = scmp.ne.s32.totalorder %s95, %s109
      %p111 = scmp.eq.s32.totalorder %s22, 0
      %p112 = por %p110, %p111
      %s114 = sadd.s32 %s113, 1
      %p117 = scmp.eq.s32.totalorder %s16, 2
      %p118 = scmp.ne.s32.totalorder %s113, %s115
      %p119 = scmp.eq.s32.totalorder %s16, 0
      %p120 = por %p118, %p119
      %p121 = scmp.ne.s32.totalorder %s113, %s115
      %p122 = scmp.eq.s32.totalorder %s21, 2
      %p123 = por %p121, %p122
      %p124 = scmp.ne.s32.totalorder %s115, %s116
      %p125 = scmp.eq.s32.totalorder %s21, 0
      %p126 = por %p124, %p125
      %p127 = scmp.ne.s32.totalorder %s115, %s116
      %p128 = scmp.eq.s32.totalorder %s22, 2
      %p129 = por %p127, %p128
      %p131 = scmp.ne.s32.totalorder %s116, %s130
      %p132 = scmp.eq.s32.totalorder %s22, 0
      %p133 = por %p131, %p132
      %s134 = ssub.s32 %s16, %s23
      %p135 = scmp.eq.s32.totalorder %s134, 0
      %s137 = sadd.s32 %s136, 1
      %s138 = scalar_select %p135, %s136, %s137
      %p141 = pneg %p135
      %p142 = scmp.eq.s32.totalorder %s16, 2
      %p143 = por %p141, %p142
      %p144 = scmp.ne.s32.totalorder %s136, %s139
      %p145 = scmp.eq.s32.totalorder %s16, 0
      %p146 = por %p144, %p145
      %p147 = scmp.ne.s32.totalorder %s136, %s139
      %p148 = scmp.eq.s32.totalorder %s21, 2
      %p149 = por %p147, %p148
      %p150 = scmp.ne.s32.totalorder %s139, %s140
      %p151 = scmp.eq.s32.totalorder %s21, 0
      %p152 = por %p150, %p151
      %p153 = scmp.ne.s32.totalorder %s139, %s140
      %p154 = scmp.eq.s32.totalorder %s22, 2
      %p155 = por %p153, %p154
      %p157 = scmp.ne.s32.totalorder %s140, %s156
      %p158 = scmp.eq.s32.totalorder %s22, 0
      %p159 = por %p157, %p158
      %s160 = ssub.s32 %s16, %s23
      %p161 = scmp.eq.s32.totalorder %s160, 0
      %s163 = sadd.s32 %s162, 1
      %s164 = scalar_select %p161, %s162, %s163
      %p167 = pneg %p161
      %p168 = scmp.eq.s32.totalorder %s16, 2
      %p169 = por %p167, %p168
      %p170 = scmp.ne.s32.totalorder %s162, %s165
      %p171 = scmp.eq.s32.totalorder %s16, 0
      %p172 = por %p170, %p171
      %p173 = scmp.ne.s32.totalorder %s162, %s165
      %p174 = scmp.eq.s32.totalorder %s21, 2
      %p175 = por %p173, %p174
      %p176 = scmp.ne.s32.totalorder %s165, %s166
      %p177 = scmp.eq.s32.totalorder %s21, 0
      %p178 = por %p176, %p177
      %p179 = scmp.ne.s32.totalorder %s165, %s166
      %p180 = scmp.eq.s32.totalorder %s22, 2
      %p181 = por %p179, %p180
      %p183 = scmp.ne.s32.totalorder %s166, %s182
      %p184 = scmp.eq.s32.totalorder %s22, 0
      %p185 = por %p183, %p184
      %p186 = scmp.le.s32.totalorder 1, %s16
      %p187 = scmp.lt.s32.totalorder %s16, 4
      %p188 = pnand %p186, %p187
      %p189 = pneg %p188
      // Predicated region
      $region9: #{tpu_custom_call.1} parent=5 // pred_check
        _
      $region10: #{tpu_custom_call.1} parent=5 // pred_check_branch
        %191 = sbr.rel (%p188) target = $region12
      $region11: #{tpu_custom_call.1} parent=5 // pred_region
        %s192 = ssub.s32 %s16, 1
        // Predicated region
        $region13: #{tpu_custom_call.1} parent=11 // pred_check
          %p193 = pneg %p63
        $region14: #{tpu_custom_call.1} parent=11 // pred_check_branch
          %195 = sbr.rel (%p193) target = $region16
        $region15: #{tpu_custom_call.1} parent=11 // pred_region
          _
        $region16: #{tpu_custom_call.1} parent=11 // pred_fallthru
          _
        // Predicated region
        $region17: #{tpu_custom_call.1} parent=11 // pred_check
          %p196 = pneg %p84
        $region18: #{tpu_custom_call.1} parent=11 // pred_check_branch
          %198 = sbr.rel (%p196) target = $region20
        $region19: #{tpu_custom_call.1} parent=11 // pred_region
          _
        $region20: #{tpu_custom_call.1} parent=11 // pred_fallthru
          _
        // Predicated region
        $region21: #{tpu_custom_call.1} parent=11 // pred_check
          %p199 = pneg %p105
        $region22: #{tpu_custom_call.1} parent=11 // pred_check_branch
          %201 = sbr.rel (%p199) target = $region24
        $region23: #{tpu_custom_call.1} parent=11 // pred_region
          %s203 = ssub.s32 2048, 2048
          %204 = vsyncadd [#allocation3], %s203
          %s205 = sshll.u32 [#allocation2], 4
          %s206 = int_to_ptr.vmem [resolvable:$true] %s205
          %211 = dma.hbm_to_vmem [thread:$0]  %s3, 2048, %s206, [#allocation3], 128, 128, 8
        $region24: #{tpu_custom_call.1} parent=11 // pred_fallthru
          _
        // Predicated region
        $region25: #{tpu_custom_call.1} parent=11 // pred_check
          %p212 = pneg %p126
        $region26: #{tpu_custom_call.1} parent=11 // pred_check_branch
          %214 = sbr.rel (%p212) target = $region28
        $region27: #{tpu_custom_call.1} parent=11 // pred_region
          _
        $region28: #{tpu_custom_call.1} parent=11 // pred_fallthru
          _
      $region12: #{tpu_custom_call.1} parent=5 // pred_fallthru
        _
      %p215 = scmp.lt.s32.totalorder %s16, 3
      // Predicated region
      $region29: #{tpu_custom_call.1} parent=5 // pred_check
        %p216 = pneg %p215
      $region30: #{tpu_custom_call.1} parent=5 // pred_check_branch
        %218 = sbr.rel (%p216) target = $region32
      $region31: #{tpu_custom_call.1} parent=5 // pred_region
        // Predicated region
        $region33: #{tpu_custom_call.1} parent=31 // pred_check
          %p219 = pneg %p36
        $region34: #{tpu_custom_call.1} parent=31 // pred_check_branch
          %221 = sbr.rel (%p219) target = $region36
        $region35: #{tpu_custom_call.1} parent=31 // pred_region
          %p222 = scmp.lt.s32.totalorder %s16, 2
          %s223 = scalar_select %p222, %s16, 2
          %s224 = smul.addr %s223, 8
          %s225 = scalar_lea.vmem %s0, %s224
        $region36: #{tpu_custom_call.1} parent=31 // pred_fallthru
          _
        // Predicated region
        $region37: #{tpu_custom_call.1} parent=31 // pred_check
          %p226 = pneg %p146
        $region38: #{tpu_custom_call.1} parent=31 // pred_check_branch
          %228 = sbr.rel (%p226) target = $region40
        $region39: #{tpu_custom_call.1} parent=31 // pred_region
          %p229 = scmp.lt.s32.totalorder %s16, 2
          %s230 = scalar_select %p229, %s16, 2
          %s231 = smul.addr %s230, 8
          %s232 = scalar_lea.vmem %s5, %s231
        $region40: #{tpu_custom_call.1} parent=31 // pred_fallthru
          _
      $region32: #{tpu_custom_call.1} parent=5 // pred_fallthru
        _
      %p233 = scmp.le.s32.totalorder 1, %s16
      %p234 = scmp.lt.s32.totalorder %s16, 4
      %p235 = pnand %p233, %p234
      %p236 = pneg %p235
      // Predicated region
      $region41: #{tpu_custom_call.1} parent=5 // pred_check
        _
      $region42: #{tpu_custom_call.1} parent=5 // pred_check_branch
        %238 = sbr.rel (%p235) target = $region44
      $region43: #{tpu_custom_call.1} parent=5 // pred_region
        %s239 = ssub.s32 %s16, 1
        // Predicated region
        $region45: #{tpu_custom_call.1} parent=43 // pred_check
          %p240 = pneg %p105
        $region46: #{tpu_custom_call.1} parent=43 // pred_check_branch
          %242 = sbr.rel (%p240) target = $region48
        $region47: #{tpu_custom_call.1} parent=43 // pred_region
          %243 = dma.done [#allocation3], 2048
        $region48: #{tpu_custom_call.1} parent=43 // pred_fallthru
          _
        %p244 = scmp.lt.s32.totalorder %s21, 2
        %s245 = scalar_select %p244, %s21, 2
        %s246 = smul.addr %s245, 8
        %s247 = scalar_lea.vmem %s0, %s246
        %p248 = pneg %p42
        %p249 = pneg %p39
        %p250 = pneg %p63
        %p251 = pneg %p60
        %p252 = pneg %p84
        %p253 = pneg %p81
        %p254 = pneg %p105
        %p255 = pneg %p102
        %p256 = pneg %p126
        %p257 = pneg %p123
        %p258 = scmp.lt.s32.totalorder %s21, 2
        %s259 = scalar_select %p258, %s21, 2
        %s260 = smul.addr %s259, 8
        %s261 = scalar_lea.vmem %s5, %s260
        %p262 = pneg %p152
        %p263 = pneg %p149
        %p264 = pneg %p178
        %p265 = pneg %p175
        %s266 = sand.u32 %s165, 1
        %s267 = scalar_lea.sflag [#allocation4], %s266
        %s268 = sand.u32 %s165, 1
        %s269 = smul.addr %s268, 8
        %s270 = scalar_lea.vmem [#allocation5], %s269
        %p271 = scmp.lt.s32.totalorder %s21, 2
        %s272 = scalar_select %p271, %s21, 2
        %s273 = smul.addr %s272, 8
        %s274 = scalar_lea.vmem %s0, %s273
        %p275 = scmp.lt.s32.totalorder %s21, 2
        %s276 = scalar_select %p275, %s21, 2
        %s277 = smul.addr %s276, 8
        %s278 = scalar_lea.vmem %s5, %s277
        %v279 = vld [vmem:[%s274] sm:$0xff]
        %280 = vadd.xlane.f32.xlu0 %v279
        %v281 = vpop.xlane.xlu0 %280
        %v282 = vmul.f32 %v279, %v279
        %283 = vadd.xlane.f32.xlu0 %v282
        %v284 = vpop.xlane.xlu0 %283
        %v285 = vmul.f32 %v281, 0.0078125
        %v286 = vmul.f32 %v284, 0.0078125
        %v287 = vmul.f32 %v285, %v285
        %v288 = vsub.f32 %v286, %v287
        %v289 = vmax.f32 %v288, 0.0
        %v290 = vadd.f32 %v289, 1e-06
        %v291 = vrsqrt.pop %v290
        %v292 = vsub.f32 %v279, %v285
        %v293 = vmul.f32 %v292, %v291
        %v294 = vld [vmem:[%s1] sm:$0x1]
        %v296 = vlaneseq
        %v297 = vshrl.u32 %v296, 7
        %v298 = vsub.s32 0, %v297
        %v299 = vrot.slane %v294, %v298
        %v301 = vmul.f32 %v293, %v299
        %v302 = vld [vmem:[%s2] sm:$0x1]
        %v304 = vlaneseq
        %v305 = vshrl.u32 %v304, 7
        %v306 = vsub.s32 0, %v305
        %v307 = vrot.slane %v302, %v306
        %v309 = vadd.f32 %v301, %v307
        %v310 = vld [vmem:[#allocation2] sm:$0xff]
        %v311 = vld [vmem:[#allocation2 + $0x8] sm:$0xff]
        %v312 = vld [vmem:[#allocation2 + $0x10] sm:$0xff]
        %v313 = vld [vmem:[#allocation2 + $0x18] sm:$0xff]
        %v314 = vld [vmem:[#allocation2 + $0x20] sm:$0xff]
        %v315 = vld [vmem:[#allocation2 + $0x28] sm:$0xff]
        %v316 = vld [vmem:[#allocation2 + $0x30] sm:$0xff]
        %v317 = vld [vmem:[#allocation2 + $0x38] sm:$0xff]
        %v318 = vld [vmem:[#allocation2 + $0x40] sm:$0xff]
        %v319 = vld [vmem:[#allocation2 + $0x48] sm:$0xff]
        %v320 = vld [vmem:[#allocation2 + $0x50] sm:$0xff]
        %v321 = vld [vmem:[#allocation2 + $0x58] sm:$0xff]
        %v322 = vld [vmem:[#allocation2 + $0x60] sm:$0xff]
        %v323 = vld [vmem:[#allocation2 + $0x68] sm:$0xff]
        %v324 = vld [vmem:[#allocation2 + $0x70] sm:$0xff]
        %v325 = vld [vmem:[#allocation2 + $0x78] sm:$0xff]
        %v326 = vld [vmem:[%s278] sm:$0xff]
        %v327 = vld [vmem:[%s4] sm:$0x1]
        %v329 = vlaneseq
        %v330 = vshrl.u32 %v329, 7
        %v331 = vsub.s32 0, %v330
        %v332 = vrot.slane %v327, %v331
        %334 = vmatprep.subr.mxu0 0.0
        %335 = vmatpush1.msra.mxu0 %v325
        %336 = vmatprep.subr.mxu0 0.0
        %337 = vmatpush1.msra.mxu0 %v324
        %338 = vmatprep.subr.mxu0 0.0
        %339 = vmatpush1.msra.mxu0 %v323
        %340 = vmatprep.subr.mxu0 0.0
        %341 = vmatpush1.msra.mxu0 %v322
        %342 = vmatprep.subr.mxu0 0.0
        %343 = vmatpush1.msra.mxu0 %v321
        %344 = vmatprep.subr.mxu0 0.0
        %345 = vmatpush1.msra.mxu0 %v320
        %346 = vmatprep.subr.mxu0 0.0
        %347 = vmatpush1.msra.mxu0 %v319
        %348 = vmatprep.subr.mxu0 0.0
        %349 = vmatpush1.msra.mxu0 %v318
        %350 = vmatprep.subr.mxu0 0.0
        %351 = vmatpush1.msra.mxu0 %v317
        %352 = vmatprep.subr.mxu0 0.0
        %353 = vmatpush1.msra.mxu0 %v316
        %354 = vmatprep.subr.mxu0 0.0
        %355 = vmatpush1.msra.mxu0 %v315
        %356 = vmatprep.subr.mxu0 0.0
        %357 = vmatpush1.msra.mxu0 %v314
        %358 = vmatprep.subr.mxu0 0.0
        %359 = vmatpush1.msra.mxu0 %v313
        %360 = vmatprep.subr.mxu0 0.0
        %361 = vmatpush1.msra.mxu0 %v312
        %362 = vmatprep.subr.mxu0 0.0
        %363 = vmatpush1.msra.mxu0 %v311
        %364 = vmatprep.subr.mxu0 0.0
        %365 = vmatpush1.msra.mxu0 %v310
        %366 = vmatprep.subr.mxu0 0.0
        %367 = vmatpush2.msra.mxu0 0.0
        %368 = vmatprep.subr.mxu0 0.0
        %369 = vmatpush2.msra.mxu0 0.0
        %370 = vmatprep.subr.mxu0 0.0
        %371 = vmatpush2.msra.mxu0 0.0
        %372 = vmatprep.subr.mxu0 0.0
        %373 = vmatpush2.msra.mxu0 0.0
        %374 = vmatprep.subr.mxu0 0.0
        %375 = vmatpush2.msra.mxu0 0.0
        %376 = vmatprep.subr.mxu0 0.0
        %377 = vmatpush2.msra.mxu0 0.0
        %378 = vmatprep.subr.mxu0 0.0
        %379 = vmatpush2.msra.mxu0 0.0
        %380 = vmatprep.subr.mxu0 0.0
        %381 = vmatpush2.msra.mxu0 0.0
        %382 = vmatprep.subr.mxu0 0.0
        %383 = vmatpush2.msra.mxu0 0.0
        %384 = vmatprep.subr.mxu0 0.0
        %385 = vmatpush2.msra.mxu0 0.0
        %386 = vmatprep.subr.mxu0 0.0
        %387 = vmatpush2.msra.mxu0 0.0
        %388 = vmatprep.subr.mxu0 0.0
        %389 = vmatpush2.msra.mxu0 0.0
        %390 = vmatprep.subr.mxu0 0.0
        %391 = vmatpush2.msra.mxu0 0.0
        %392 = vmatprep.subr.mxu0 0.0
        %393 = vmatpush2.msra.mxu0 0.0
        %394 = vmatprep.subr.mxu0 0.0
        %395 = vmatpush2.msra.mxu0 0.0
        %396 = vmatprep.subr.mxu0 0.0
        %397 = vmatpush2.msra.mxu0 0.0
        %398 = vmatprep.mubr.f32.mxu0 0.0
        %399 = vmatmul.mubr.f32.gmra.mxu0 %v309
        %v400 = vpop.f32.mrf.mxu0
        %v401 = vadd.f32 %v332, %v400
        %v402 = vpop.f32.mrf.mxu0
        %403 = vdwg.mxu0
        %405 = vset.pattern.permute.xlu0 0
        %406 = vperm.xlu0 %405, %v326
        %v407 = vpop.permute.xlu0 %406
        %v409 = vmul.f32 %v401, %v407
        %v410 = vadd.f32 %v279, %v409
        %411 = vst [vmem:[%s270] sm:$0xff] %v410
        %s412 = sand.u32 %s165, 1
        %s413 = scalar_lea.sflag [#allocation4], %s412
        %s414 = sand.u32 %s165, 1
        %s415 = smul.addr %s414, 8
        %s416 = scalar_lea.vmem [#allocation5], %s415
        // Predicated region
        $region49: #{tpu_custom_call.1} parent=43 // pred_check
          %p417 = pneg %p175
        $region50: #{tpu_custom_call.1} parent=43 // pred_check_branch
          %419 = sbr.rel (%p417) target = $region52
        $region51: #{tpu_custom_call.1} parent=43 // pred_region
          %s421 = ssub.s32 128, 128
          %422 = vsyncadd %s413, %s421
          %s423 = smul.addr %s21, 128
          %s424 = scalar_lea.hbm %s6, %s423
          %s426 = sshll.u32 %s416, 4
          %s427 = int_to_ptr.vmem [resolvable:$true] %s426
          %429 = dma.vmem_to_hbm [thread:$0]  %s427, 128, %s424, %s413
        $region52: #{tpu_custom_call.1} parent=43 // pred_fallthru
          _
      $region44: #{tpu_custom_call.1} parent=5 // pred_fallthru
        _
      %p430 = scmp.le.s32.totalorder 2, %s16
      // Predicated region
      $region53: #{tpu_custom_call.1} parent=5 // pred_check
        %p431 = pneg %p430
      $region54: #{tpu_custom_call.1} parent=5 // pred_check_branch
        %433 = sbr.rel (%p431) target = $region56
      $region55: #{tpu_custom_call.1} parent=5 // pred_region
        %s434 = ssub.s32 %s16, 2
        // Predicated region
        $region57: #{tpu_custom_call.1} parent=55 // pred_check
          %p435 = pneg %p181
        $region58: #{tpu_custom_call.1} parent=55 // pred_check_branch
          %437 = sbr.rel (%p435) target = $region60
        $region59: #{tpu_custom_call.1} parent=55 // pred_region
          %s438 = sand.u32 %s166, 1
          %s439 = scalar_lea.sflag [#allocation4], %s438
          %s440 = sand.u32 %s166, 1
          %s441 = smul.addr %s440, 8
          %s442 = scalar_lea.vmem [#allocation5], %s441
          %443 = dma.done %s439, 128
        $region60: #{tpu_custom_call.1} parent=55 // pred_fallthru
          _
      $region56: #{tpu_custom_call.1} parent=5 // pred_fallthru
        _
    $region6: #{tpu_custom_call.1} parent=1 // loop_footer
      %s20 = sadd.s32 1, %s16
    $region7: #{tpu_custom_call.1} parent=1 // loop_footer_branch
      %15 = sbr.rel target = $region3
    $region8: #{tpu_custom_call.1} parent=1 // loop_exit
      _
    %444 = vsyncpa [#allocation3], 1
    %s445 = scalar_lea.sflag [#allocation3], 1
    %446 = vsyncpa %s445, 1
    %447 = vsyncpa [#allocation4], 1
    %s448 = scalar_lea.sflag [#allocation4], 1
    %449 = vsyncpa %s448, 1

</llo_original>
